<compile_context>
chip_gen: v5e
topology: v5e:2x2
jax: 0.10.0
libtpu: 0.0.40
codegen_flags: <defaults>
</compile_context>

<pallas_src>
import jax
import jax.numpy as jnp
from jax import lax
from jax.experimental import pallas as pl
from jax.experimental.pallas import tpu as pltpu


def _round_up(a: int, b: int) -> int:
    return (a + b - 1) // b * b


def _cdiv(a: int, b: int) -> int:
    return (a + b - 1) // b


def _make_lora_kernel(with_bias, weight_dtype, scale):
    """Kernel factory: grid = (row tiles, C_in tiles)."""

    def kernel(x_ref, dw_ref, uw_ref, *rest):
        if with_bias:
            b_ref, o_ref, acc_ref = rest
        else:
            b_ref = None
            o_ref, acc_ref = rest

        k = pl.program_id(1)

        @pl.when(k == 0)
        def _init():
            acc_ref[...] = jnp.zeros_like(acc_ref)

        x = x_ref[...]                               # (tm, tk), activation dtype
        if x.dtype != weight_dtype:
            # PyTorch: hidden_states.to(weight dtype) — done on the VMEM tile only.
            x = x.astype(weight_dtype)
        # Contract the lane axis of both operands:
        # (tm, tk) x (rank, tk) -> (tm, rank), f32 accumulation on the MXU.
        acc_ref[...] += lax.dot_general(
            x, dw_ref[...], (((1,), (1,)), ((), ())),
            preferred_element_type=jnp.float32)

        @pl.when(k == pl.num_programs(1) - 1)
        def _finalize():
            down = acc_ref[...]
            if down.dtype != weight_dtype:
                down = down.astype(weight_dtype)
            # (tm, rank) x (rank, C_out) -> (tm, C_out), f32 accumulation.
            up = lax.dot_general(
                down, uw_ref[...], (((1,), (0,)), ((), ())),
                preferred_element_type=jnp.float32)
            if with_bias:
                up = up + b_ref[...].astype(jnp.float32)
            if scale != 1.0:
                up = up * jnp.float32(scale)
            o_ref[...] = up.astype(o_ref.dtype)

    return kernel


def lora_linear_w_bias(hidden_states, down_w, up_w, bias=None,
                       network_alpha=None, rank=4, tm=512):
    """Forward of LoRALinearLayerwBias.

    hidden_states: (B, S, in_features), any float dtype (orig_dtype).
    down_w: (rank, in_features)   (torch nn.Linear weight layout)
    up_w:   (out_features, rank)
    bias:   (1, 1, out_features) or None
    Returns (B, S, out_features) in hidden_states.dtype.
    """
    orig_dtype = hidden_states.dtype
    weight_dtype = down_w.dtype
    B, S, C_in = hidden_states.shape
    C_out, r = up_w.shape
    assert r == rank and down_w.shape == (rank, C_in)
    with_bias = bias is not None
    scale = 1.0 if network_alpha is None else float(network_alpha) / float(rank)

    x_item = jnp.dtype(orig_dtype).itemsize
    o_item = x_item
    w_item = jnp.dtype(weight_dtype).itemsize
    row_mult = {4: 8, 2: 16, 1: 32}.get(x_item, 8)
    M = B * S

    # ---- generation-aware VMEM budget (~75% of physical per-core VMEM) ------
    try:
        vmem_cap = int(getattr(pltpu.get_tpu_info(), "vmem_capacity_bytes",
                               64 * 1024 * 1024))
    except Exception:
        vmem_cap = 64 * 1024 * 1024          # conservative (v7x-sized) fallback
    vmem_budget = (3 * vmem_cap) // 4

    def vmem_bytes(tm_v, tk_v):
        return (2 * tm_v * tk_v * x_item             # x tiles (double buffered)
                + 2 * tm_v * C_out * o_item           # out tiles (double buffered)
                + tm_v * C_out * 4                    # f32 up-projection epilogue
                + tm_v * 128 * 4                      # acc scratch (lane-padded rank)
                + 2 * 8 * tk_v * w_item               # down-weight tiles
                + 2 * 8 * C_out * w_item              # up-weight tile
                + (2 * 8 * C_out * 4 if with_bias else 0))

    # ---- row tile: big, sublane-aligned, >= 2 grid steps when possible ------
    if M <= row_mult:
        tm_eff = M                                    # single full block
    else:
        half = _round_up(_cdiv(M, 2), row_mult)       # keep both v7x TCs busy
        tm_eff = max(row_mult, min(_round_up(tm, row_mult), half))

    # ---- C_in tile: full C_in if it fits, else a multiple-of-128 divisor ----
    def pick_tk(tm_v):
        if vmem_bytes(tm_v, C_in) <= vmem_budget:
            return C_in
        d = (C_in // 128) * 128
        while d >= 128:
            if C_in % d == 0 and vmem_bytes(tm_v, d) <= vmem_budget:
                return d
            d -= 128
        return None

    tk = pick_tk(tm_eff)
    while tk is None and tm_eff > row_mult:
        tm_eff = max(row_mult, _round_up(tm_eff // 2, row_mult))
        tk = pick_tk(tm_eff)
    if tk is None:
        # TODO(synk): mask a ragged last C_in block so non-divisor tk values work.
        tk = C_in

    num_m = _cdiv(M, tm_eff)
    num_k = _cdiv(C_in, tk)

    vmem_limit = int(min(max(32 * 1024 * 1024, int(vmem_bytes(tm_eff, tk) * 1.25)),
                         int(vmem_cap * 0.85)))

    x2d = hidden_states.reshape(M, C_in)              # free reshape, no padding
    uw = up_w.T                                       # (rank, C_out): tiny, sublane-dense

    in_specs = [
        pl.BlockSpec((tm_eff, tk), lambda i, k: (i, k)),    # activations
        pl.BlockSpec((rank, tk), lambda i, k: (0, k)),      # down weight (native layout)
        pl.BlockSpec((rank, C_out), lambda i, k: (0, 0)),   # up weight
    ]
    operands = [x2d, down_w, uw]
    if with_bias:
        in_specs.append(pl.BlockSpec((1, C_out), lambda i, k: (0, 0)))
        operands.append(bias.reshape(1, C_out))

    bias_bytes = C_out * jnp.dtype(bias.dtype).itemsize if with_bias else 0
    cost = pl.CostEstimate(
        flops=2 * M * rank * (C_in + C_out),
        transcendentals=0,
        bytes_accessed=(M * C_in * x_item + M * C_out * o_item
                        + rank * C_in * w_item + rank * C_out * w_item
                        + bias_bytes))

    kernel = _make_lora_kernel(with_bias, weight_dtype, scale)

    out2d = pl.pallas_call(
        kernel,
        out_shape=jax.ShapeDtypeStruct((M, C_out), orig_dtype),
        grid_spec=pltpu.PrefetchScalarGridSpec(
            num_scalar_prefetch=0,
            grid=(num_m, num_k),
            in_specs=in_specs,
            out_specs=pl.BlockSpec((tm_eff, C_out), lambda i, k: (i, 0)),
            scratch_shapes=[pltpu.VMEM((tm_eff, rank), jnp.float32)],
        ),
        compiler_params=pltpu.CompilerParams(
            dimension_semantics=("parallel", "arbitrary"),
            vmem_limit_bytes=vmem_limit),
        cost_estimate=cost,
    )(*operands)

    return out2d.reshape(B, S, C_out)


if __name__ == "__main__":
    in_features = 32
    out_features = 32
    rank = 4
    network_alpha = 4.0

    def reference(hs, dw, uw, b, alpha, r):
        out = hs @ dw.T @ uw.T
        if b is not None:
            out = out + b
        if alpha is not None:
            out = out * (alpha / r)
        return out.astype(hs.dtype)

    key = jax.random.PRNGKey(0)
    k_x, k_down, k_up, k_bias, k_x2 = jax.random.split(key, 5)

    # Parameters mirroring the module's __init__ (down ~ N(0, 1/rank); up/bias
    # would be zero, so they are perturbed deterministically for a meaningful
    # numeric check).
    down_w = (1.0 / rank) * jax.random.normal(k_down, (rank, in_features), jnp.float32)
    up_w = 0.01 * jax.random.normal(k_up, (out_features, rank), jnp.float32)
    bias = 0.1 * jax.random.normal(k_bias, (1, 1, out_features), jnp.float32)

    # Case 1: with bias + network_alpha, M divisible by the row tile.
    B, S = 2, 8
    hs = jax.random.normal(k_x, (B, S, in_features), jnp.float32)
    out = lora_linear_w_bias(hs, down_w, up_w, bias=bias,
                             network_alpha=network_alpha, rank=rank)
    out = jax.block_until_ready(out)
    ref = reference(hs, down_w, up_w, bias, network_alpha, rank)
    assert out.shape == (B, S, out_features)
    assert out.dtype == hs.dtype
    assert jnp.allclose(out, ref, atol=1e-5, rtol=1e-5)

    # Case 2: no bias / no alpha, ragged M (exercises the partial last row tile
    # that replaces the old pad-over-M + slice).
    B2, S2 = 1, 13
    hs2 = jax.random.normal(k_x2, (B2, S2, in_features), jnp.float32)
    out2 = lora_linear_w_bias(hs2, down_w, up_w, bias=None,
                              network_alpha=None, rank=rank)
    out2 = jax.block_until_ready(out2)
    ref2 = reference(hs2, down_w, up_w, None, None, rank)
    assert out2.shape == (B2, S2, out_features)
    assert out2.dtype == hs2.dtype
    assert jnp.allclose(out2, ref2, atol=1e-5, rtol=1e-5)

    print("KERNEL_OK")
</pallas_src>

<mosaic_0001>
module attributes {stable_mosaic.version = 11 : i64} {
  func.func @kernel(%arg0: i32, %arg1: i32, %arg2: memref<8x32xf32, #tpu.memory_space<vmem>>, %arg3: memref<4x32xf32, #tpu.memory_space<vmem>>, %arg4: memref<4x32xf32, #tpu.memory_space<vmem>>, %arg5: memref<1x32xf32, #tpu.memory_space<vmem>>, %arg6: memref<8x32xf32, #tpu.memory_space<vmem>>, %arg7: memref<8x4xf32, #tpu.memory_space<vmem>>) attributes {dimension_semantics = [#tpu.dimension_semantics<parallel>, #tpu.dimension_semantics<arbitrary>], iteration_bounds = array<i64: 2, 1>, scalar_prefetch = 0 : i64, scratch_operands = 1 : i64, tpu.core_type = #tpu.core_type<tc>, window_params = [{transform_indices = @transform_0, window_bounds = array<i64: 8, 32>}, {transform_indices = @transform_1, window_bounds = array<i64: 4, 32>}, {pipeline_mode = #tpu.pipeline_mode<synchronous>, transform_indices = @transform_2, window_bounds = array<i64: 4, 32>}, {pipeline_mode = #tpu.pipeline_mode<synchronous>, transform_indices = @transform_3, window_bounds = array<i64: 1, 32>}, {transform_indices = @transform_4, window_bounds = array<i64: 8, 32>}]} {
    %c0_i32 = arith.constant 0 : i32
    %0 = arith.cmpi eq, %arg1, %c0_i32 : i32
    %1 = arith.extui %0 : i1 to i32
    %c0_i32_0 = arith.constant 0 : i32
    %2 = arith.cmpi ne, %1, %c0_i32_0 : i32
    scf.if %2 {
      %cst_10 = arith.constant 0.000000e+00 : f32
      %12 = vector.broadcast %cst_10 : f32 to vector<8x4xf32>
      %c0_11 = arith.constant 0 : index
      %c0_12 = arith.constant 0 : index
      %13 = vector.load %arg7[%c0_11, %c0_12] : memref<8x4xf32, #tpu.memory_space<vmem>>, vector<8x4xf32>
      tpu.vector_store %arg7[%c0_11, %c0_12], %12 {strides = array<i32>} : memref<8x4xf32, #tpu.memory_space<vmem>>, vector<8x4xf32>,
    } else {
    }
    %c0 = arith.constant 0 : index
    %c0_1 = arith.constant 0 : index
    %3 = vector.load %arg2[%c0, %c0_1] : memref<8x32xf32, #tpu.memory_space<vmem>>, vector<8x32xf32>
    %c0_2 = arith.constant 0 : index
    %c0_3 = arith.constant 0 : index
    %4 = vector.load %arg7[%c0_2, %c0_3] : memref<8x4xf32, #tpu.memory_space<vmem>>, vector<8x4xf32>
    %c0_4 = arith.constant 0 : index
    %c0_5 = arith.constant 0 : index
    %5 = vector.load %arg3[%c0_4, %c0_5] : memref<4x32xf32, #tpu.memory_space<vmem>>, vector<4x32xf32>
    %cst = arith.constant dense<0.000000e+00> : vector<8x4xf32>
    %6 = tpu.matmul %3, %5, %cst {dimension_numbers = #tpu.dot_dimension_numbers<[1], [1], [0], [0], [0, 0, 1, 0], [], []>} : vector<8x32xf32>, vector<4x32xf32>, vector<8x4xf32> -> vector<8x4xf32>
    %7 = arith.addf %4, %6 : vector<8x4xf32>
    %c0_6 = arith.constant 0 : index
    %c0_7 = arith.constant 0 : index
    %8 = vector.load %arg7[%c0_6, %c0_7] : memref<8x4xf32, #tpu.memory_space<vmem>>, vector<8x4xf32>
    tpu.vector_store %arg7[%c0_6, %c0_7], %7 {strides = array<i32>} : memref<8x4xf32, #tpu.memory_space<vmem>>, vector<8x4xf32>,
    %c0_i32_8 = arith.constant 0 : i32
    %9 = arith.cmpi eq, %arg1, %c0_i32_8 : i32
    %10 = arith.extui %9 : i1 to i32
    %c0_i32_9 = arith.constant 0 : i32
    %11 = arith.cmpi ne, %10, %c0_i32_9 : i32
    scf.if %11 {
      %c0_10 = arith.constant 0 : index
      %c0_11 = arith.constant 0 : index
      %12 = vector.load %arg7[%c0_10, %c0_11] : memref<8x4xf32, #tpu.memory_space<vmem>>, vector<8x4xf32>
      %c0_12 = arith.constant 0 : index
      %c0_13 = arith.constant 0 : index
      %13 = vector.load %arg4[%c0_12, %c0_13] : memref<4x32xf32, #tpu.memory_space<vmem>>, vector<4x32xf32>
      %cst_14 = arith.constant dense<0.000000e+00> : vector<8x32xf32>
      %14 = tpu.matmul %12, %13, %cst_14 {dimension_numbers = #tpu.dot_dimension_numbers<[1], [0], [0], [1], [0, 0, 1, 1], [], []>} : vector<8x4xf32>, vector<4x32xf32>, vector<8x32xf32> -> vector<8x32xf32>
      %c0_15 = arith.constant 0 : index
      %c0_16 = arith.constant 0 : index
      %15 = vector.load %arg5[%c0_15, %c0_16] : memref<1x32xf32, #tpu.memory_space<vmem>>, vector<1x32xf32>
      %16 = vector.broadcast %15 : vector<1x32xf32> to vector<8x32xf32>
      %17 = arith.addf %14, %16 : vector<8x32xf32>
      %c0_17 = arith.constant 0 : index
      %c0_18 = arith.constant 0 : index
      %18 = vector.load %arg6[%c0_17, %c0_18] : memref<8x32xf32, #tpu.memory_space<vmem>>, vector<8x32xf32>
      tpu.vector_store %arg6[%c0_17, %c0_18], %17 {strides = array<i32>} : memref<8x32xf32, #tpu.memory_space<vmem>>, vector<8x32xf32>,
    } else {
    }
    return
  }
  func.func @transform_0(%arg0: i32, %arg1: i32) -> (i32, i32) {
    %c0_i32 = arith.constant 0 : i32
    return %arg0, %arg1 : i32, i32
  }
  func.func @transform_1(%arg0: i32, %arg1: i32) -> (i32, i32) {
    %c0_i32 = arith.constant 0 : i32
    %c0_i32_0 = arith.constant 0 : i32
    return %c0_i32, %arg1 : i32, i32
  }
  func.func @transform_2(%arg0: i32, %arg1: i32) -> (i32, i32) {
    %c0_i32 = arith.constant 0 : i32
    %c0_i32_0 = arith.constant 0 : i32
    %c0_i32_1 = arith.constant 0 : i32
    return %c0_i32, %c0_i32_0 : i32, i32
  }
  func.func @transform_3(%arg0: i32, %arg1: i32) -> (i32, i32) {
    %c0_i32 = arith.constant 0 : i32
    %c0_i32_0 = arith.constant 0 : i32
    %c0_i32_1 = arith.constant 0 : i32
    return %c0_i32, %c0_i32_0 : i32, i32
  }
  func.func @transform_4(%arg0: i32, %arg1: i32) -> (i32, i32) {
    %c0_i32 = arith.constant 0 : i32
    %c0_i32_0 = arith.constant 0 : i32
    return %arg0, %c0_i32 : i32, i32
  }
}

</mosaic_0001>

<llo_original>
// kernel: tpu_custom_call.1
$region0: #{tpu_custom_call.1}
  #allocation0 [shape = 'u32[]', space=smem, size = 0x4, offset = 0x4, fixed_abs, tag = 'smem constant byte address 0x4 - core index']
  #allocation1 [shape = 'u32[72,128]{1,0:T(1,128)}', space=vmem, size = 0x9000, scoped, tag = 'internal scratch']
  #allocation2 [shape = 'f32[8,4]{1,0:T(8,128)}', space=vmem, size = 0x1000, scoped, tag = 'scratch operand']
  %s0 = inlined_call_operand.hbm [shape: f32[16,32], index: 0, kind: input, shape index: {}]
  %s1 = inlined_call_operand.hbm [shape: f32[4,32], index: 1, kind: input, shape index: {}]
  %s2 = inlined_call_operand.hbm [shape: f32[4,32], index: 2, kind: input, shape index: {}]
  %s3 = inlined_call_operand.vmem [shape: f32[1,32], index: 3, kind: input, shape index: {}]
  %s4 = inlined_call_operand.hbm [shape: f32[16,32], index: 4, kind: output, shape index: {}]
  %s5 = sld [smem:[#allocation0]]
  $region69: #{tpu_custom_call.1} parent=0
    _
  %s7 = ssub.s32 1, %s5
  %s8 = scalar_select 0, %s7, %s5
  $region1: #{tpu_custom_call.1} parent=0
    #allocation3 [shape = 'u8[8192]{0}', space=vmem, size = 0x2000, scoped, tag = 'input window, operand 0']
    #allocation4 [shape = 's32[2]{0}', space=sflag, size = 0x8, scoped, tag = 'scoped memory for tpu_custom_call.1']
    #allocation5 [shape = 's32[2]{0}', space=sflag, size = 0x8, scoped, tag = 'scoped memory for tpu_custom_call.1']
    #allocation6 [shape = 'u8[2048]{0}', space=vmem, size = 0x800, scoped, tag = 'input window, operand 1, single buffered']
    #allocation7 [shape = 's32[1]{0}', space=sflag, size = 0x4, scoped, tag = 'scoped memory for tpu_custom_call.1']
    #allocation8 [shape = 'u8[2048]{0}', space=vmem, size = 0x800, scoped, tag = 'input window, operand 2, single buffered']
    #allocation9 [shape = 'u8[8192]{0}', space=vmem, size = 0x2000, scoped, tag = 'output window, operand 0']
    %9 = vsyncpa [#allocation4], 0
    %s10 = scalar_lea.sflag [#allocation4], 1
    %11 = vsyncpa %s10, 0
    %12 = vsyncpa [#allocation7], 0
    %13 = vsyncpa [#allocation5], 0
    %s14 = scalar_lea.sflag [#allocation5], 1
    %15 = vsyncpa %s14, 0
    loop: start=0, step=1, limit=4
    $region2: #{tpu_custom_call.1} parent=1 // loop_pre_header
      _
    $region3: #{tpu_custom_call.1} parent=1 // loop_header
      %s17 = sphi 0, %s21
      %p18 = scmp.ge.s32.totalorder %s17, 4
      %s24 = sphi 0, %s36
      %s25 = sphi 0, %s32
      %s26 = sphi 0, %s24
      %s27 = sphi 0, %s25
      %s28 = sphi 0, %s26
      %s29 = sphi 0, %s27
      %s41 = sphi 0, %s43
      %s44 = sphi 0, %s41
      %s45 = sphi 0, %s44
      %s61 = sphi 0, %s45
      %s67 = sphi 0, %s69
      %s70 = sphi 0, %s67
      %s71 = sphi 0, %s70
      %s87 = sphi 0, %s71
      %s91 = sphi 0, %s91
      %s93 = sphi 0, %s91
      %s94 = sphi 0, %s93
      %s108 = sphi 0, %s94
      %s112 = sphi 0, %s112
      %s114 = sphi 0, %s112
      %s115 = sphi 0, %s114
      %s129 = sphi 0, %s115
      %s135 = sphi 0, %s137
      %s138 = sphi 0, %s135
      %s139 = sphi 0, %s138
      %s155 = sphi 0, %s139
    $region4: #{tpu_custom_call.1} parent=1 // loop_header_branch
      %20 = sbr.rel (%p18) target = $region8
    $region5: #{tpu_custom_call.1} parent=1 // loop_body
      %s22 = ssub.s32 %s17, 1
      %s23 = ssub.s32 %s17, 2
      %s30 = sadd.s32 1, %s25
      %p31 = scmp.ge.s32.totalorder %s30, 1
      %s32 = scalar_select %p31, 0, %s30
      %s33 = sadd.s32 1, %s24
      %s34 = scalar_select %p31, %s33, %s24
      %p35 = scmp.ge.s32.totalorder %s34, 2
      %s36 = scalar_select %p35, 0, %s34
      %s37 = ssub.s32 %s24, %s36
      %s38 = ssub.s32 %s25, %s32
      %s39 = sor.u32 %s37, %s38
      %p40 = scmp.eq.s32.totalorder %s39, 0
      %s42 = sadd.s32 %s41, 1
      %s43 = scalar_select %p40, %s41, %s42
      %p46 = pneg %p40
      %p47 = scmp.eq.s32.totalorder %s17, 1
      %p48 = por %p46, %p47
      %p49 = scmp.ne.s32.totalorder %s41, %s44
      %p50 = scmp.eq.s32.totalorder %s17, 0
      %p51 = por %p49, %p50
      %p52 = scmp.ne.s32.totalorder %s41, %s44
      %p53 = scmp.eq.s32.totalorder %s22, 1
      %p54 = por %p52, %p53
      %p55 = scmp.ne.s32.totalorder %s44, %s45
      %p56 = scmp.eq.s32.totalorder %s22, 0
      %p57 = por %p55, %p56
      %p58 = scmp.ne.s32.totalorder %s44, %s45
      %p59 = scmp.eq.s32.totalorder %s23, 1
      %p60 = por %p58, %p59
      %p62 = scmp.ne.s32.totalorder %s45, %s61
      %p63 = scmp.eq.s32.totalorder %s23, 0
      %p64 = por %p62, %p63
      %s65 = ssub.s32 %s25, %s32
      %p66 = scmp.eq.s32.totalorder %s65, 0
      %s68 = sadd.s32 %s67, 1
      %s69 = scalar_select %p66, %s67, %s68
      %p72 = pneg %p66
      %p73 = scmp.eq.s32.totalorder %s17, 1
      %p74 = por %p72, %p73
      %p75 = scmp.ne.s32.totalorder %s67, %s70
      %p76 = scmp.eq.s32.totalorder %s17, 0
      %p77 = por %p75, %p76
      %p78 = scmp.ne.s32.totalorder %s67, %s70
      %p79 = scmp.eq.s32.totalorder %s22, 1
      %p80 = por %p78, %p79
      %p81 = scmp.ne.s32.totalorder %s70, %s71
      %p82 = scmp.eq.s32.totalorder %s22, 0
      %p83 = por %p81, %p82
      %p84 = scmp.ne.s32.totalorder %s70, %s71
      %p85 = scmp.eq.s32.totalorder %s23, 1
      %p86 = por %p84, %p85
      %p88 = scmp.ne.s32.totalorder %s71, %s87
      %p89 = scmp.eq.s32.totalorder %s23, 0
      %p90 = por %p88, %p89
      %s92 = sadd.s32 %s91, 1
      %p95 = scmp.eq.s32.totalorder %s17, 1
      %p96 = scmp.ne.s32.totalorder %s91, %s93
      %p97 = scmp.eq.s32.totalorder %s17, 0
      %p98 = por %p96, %p97
      %p99 = scmp.ne.s32.totalorder %s91, %s93
      %p100 = scmp.eq.s32.totalorder %s22, 1
      %p101 = por %p99, %p100
      %p102 = scmp.ne.s32.totalorder %s93, %s94
      %p103 = scmp.eq.s32.totalorder %s22, 0
      %p104 = por %p102, %p103
      %p105 = scmp.ne.s32.totalorder %s93, %s94
      %p106 = scmp.eq.s32.totalorder %s23, 1
      %p107 = por %p105, %p106
      %p109 = scmp.ne.s32.totalorder %s94, %s108
      %p110 = scmp.eq.s32.totalorder %s23, 0
      %p111 = por %p109, %p110
      %s113 = sadd.s32 %s112, 1
      %p116 = scmp.eq.s32.totalorder %s17, 1
      %p117 = scmp.ne.s32.totalorder %s112, %s114
      %p118 = scmp.eq.s32.totalorder %s17, 0
      %p119 = por %p117, %p118
      %p120 = scmp.ne.s32.totalorder %s112, %s114
      %p121 = scmp.eq.s32.totalorder %s22, 1
      %p122 = por %p120, %p121
      %p123 = scmp.ne.s32.totalorder %s114, %s115
      %p124 = scmp.eq.s32.totalorder %s22, 0
      %p125 = por %p123, %p124
      %p126 = scmp.ne.s32.totalorder %s114, %s115
      %p127 = scmp.eq.s32.totalorder %s23, 1
      %p128 = por %p126, %p127
      %p130 = scmp.ne.s32.totalorder %s115, %s129
      %p131 = scmp.eq.s32.totalorder %s23, 0
      %p132 = por %p130, %p131
      %s133 = ssub.s32 %s24, %s36
      %p134 = scmp.eq.s32.totalorder %s133, 0
      %s136 = sadd.s32 %s135, 1
      %s137 = scalar_select %p134, %s135, %s136
      %p140 = pneg %p134
      %p141 = scmp.eq.s32.totalorder %s17, 1
      %p142 = por %p140, %p141
      %p143 = scmp.ne.s32.totalorder %s135, %s138
      %p144 = scmp.eq.s32.totalorder %s17, 0
      %p145 = por %p143, %p144
      %p146 = scmp.ne.s32.totalorder %s135, %s138
      %p147 = scmp.eq.s32.totalorder %s22, 1
      %p148 = por %p146, %p147
      %p149 = scmp.ne.s32.totalorder %s138, %s139
      %p150 = scmp.eq.s32.totalorder %s22, 0
      %p151 = por %p149, %p150
      %p152 = scmp.ne.s32.totalorder %s138, %s139
      %p153 = scmp.eq.s32.totalorder %s23, 1
      %p154 = por %p152, %p153
      %p156 = scmp.ne.s32.totalorder %s139, %s155
      %p157 = scmp.eq.s32.totalorder %s23, 0
      %p158 = por %p156, %p157
      %p159 = scmp.le.s32.totalorder 1, %s17
      %p160 = scmp.lt.s32.totalorder %s17, 3
      %p161 = pnand %p159, %p160
      %p162 = pneg %p161
      // Predicated region
      $region9: #{tpu_custom_call.1} parent=5 // pred_check
        _
      $region10: #{tpu_custom_call.1} parent=5 // pred_check_branch
        %164 = sbr.rel (%p161) target = $region12
      $region11: #{tpu_custom_call.1} parent=5 // pred_region
        %s165 = ssub.s32 %s17, 1
        // Predicated region
        $region13: #{tpu_custom_call.1} parent=11 // pred_check
          %p166 = pneg %p83
        $region14: #{tpu_custom_call.1} parent=11 // pred_check_branch
          %168 = sbr.rel (%p166) target = $region16
        $region15: #{tpu_custom_call.1} parent=11 // pred_region
          %170 = vsyncadd [#allocation7], 0
          %s171 = smul.addr %s27, 4
          %s172 = scalar_lea.hbm %s1, %s171
          %s174 = sshll.u32 %s172, 4
          %s175 = int_to_ptr.hbm [resolvable:$true] %s174
          %s176 = sshll.u32 [#allocation6], 4
          %s177 = int_to_ptr.vmem [resolvable:$true] %s176
          %179 = dma.hbm_to_vmem [thread:$0]  %s175, 64, %s177, [#allocation7]
        $region16: #{tpu_custom_call.1} parent=11 // pred_fallthru
          _
        // Predicated region
        $region17: #{tpu_custom_call.1} parent=11 // pred_check
          %p180 = pneg %p104
        $region18: #{tpu_custom_call.1} parent=11 // pred_check_branch
          %182 = sbr.rel (%p180) target = $region20
        $region19: #{tpu_custom_call.1} parent=11 // pred_region
          %184 = vsyncadd [#allocation7], 0
          %s186 = sshll.u32 %s2, 4
          %s187 = int_to_ptr.hbm [resolvable:$true] %s186
          %s188 = sshll.u32 [#allocation8], 4
          %s189 = int_to_ptr.vmem [resolvable:$true] %s188
          %191 = dma.hbm_to_vmem [thread:$0]  %s187, 64, %s189, [#allocation7]
        $region20: #{tpu_custom_call.1} parent=11 // pred_fallthru
          _
        // Predicated region
        $region21: #{tpu_custom_call.1} parent=11 // pred_check
          %p192 = pneg %p125
        $region22: #{tpu_custom_call.1} parent=11 // pred_check_branch
          %194 = sbr.rel (%p192) target = $region24
        $region23: #{tpu_custom_call.1} parent=11 // pred_region
          _
        $region24: #{tpu_custom_call.1} parent=11 // pred_fallthru
          _
      $region12: #{tpu_custom_call.1} parent=5 // pred_fallthru
        _
      %p195 = scmp.lt.s32.totalorder %s17, 2
      // Predicated region
      $region25: #{tpu_custom_call.1} parent=5 // pred_check
        %p196 = pneg %p195
      $region26: #{tpu_custom_call.1} parent=5 // pred_check_branch
        %198 = sbr.rel (%p196) target = $region28
      $region27: #{tpu_custom_call.1} parent=5 // pred_region
        // Predicated region
        $region29: #{tpu_custom_call.1} parent=27 // pred_check
          %p199 = pneg %p51
        $region30: #{tpu_custom_call.1} parent=27 // pred_check_branch
          %201 = sbr.rel (%p199) target = $region32
        $region31: #{tpu_custom_call.1} parent=27 // pred_region
          %s202 = sand.u32 %s41, 1
          %s203 = scalar_lea.sflag [#allocation4], %s202
          %s204 = sand.u32 %s41, 1
          %s205 = smul.addr %s204, 8
          %s206 = scalar_lea.vmem [#allocation3], %s205
          %208 = vsyncadd %s203, 0
          %s209 = sadd.s32 %s25, %s24
          %s210 = smul.addr %s209, 8
          %s211 = scalar_lea.hbm %s0, %s210
          %s213 = sshll.u32 %s211, 4
          %s214 = int_to_ptr.hbm [resolvable:$true] %s213
          %s215 = sshll.u32 %s206, 4
          %s216 = int_to_ptr.vmem [resolvable:$true] %s215
          %218 = dma.hbm_to_vmem [thread:$0]  %s214, 128, %s216, %s203
        $region32: #{tpu_custom_call.1} parent=27 // pred_fallthru
          _
      $region28: #{tpu_custom_call.1} parent=5 // pred_fallthru
        _
      %p219 = scmp.le.s32.totalorder 1, %s17
      %p220 = scmp.lt.s32.totalorder %s17, 3
      %p221 = pnand %p219, %p220
      %p222 = pneg %p221
      // Predicated region
      $region33: #{tpu_custom_call.1} parent=5 // pred_check
        _
      $region34: #{tpu_custom_call.1} parent=5 // pred_check_branch
        %224 = sbr.rel (%p221) target = $region36
      $region35: #{tpu_custom_call.1} parent=5 // pred_region
        %s225 = ssub.s32 %s17, 1
        %s226 = sand.u32 %s44, 1
        %s227 = scalar_lea.sflag [#allocation4], %s226
        %s228 = sand.u32 %s44, 1
        %s229 = smul.addr %s228, 8
        %s230 = scalar_lea.vmem [#allocation3], %s229
        // Predicated region
        $region37: #{tpu_custom_call.1} parent=35 // pred_check
          %p231 = pneg %p57
        $region38: #{tpu_custom_call.1} parent=35 // pred_check_branch
          %233 = sbr.rel (%p231) target = $region40
        $region39: #{tpu_custom_call.1} parent=35 // pred_region
          %235 = dma.done %s227, 128
        $region40: #{tpu_custom_call.1} parent=35 // pred_fallthru
          _
        // Predicated region
        $region41: #{tpu_custom_call.1} parent=35 // pred_check
          %p236 = pneg %p83
        $region42: #{tpu_custom_call.1} parent=35 // pred_check_branch
          %238 = sbr.rel (%p236) target = $region44
        $region43: #{tpu_custom_call.1} parent=35 // pred_region
          %240 = dma.done [#allocation7], 64
        $region44: #{tpu_custom_call.1} parent=35 // pred_fallthru
          _
        // Predicated region
        $region45: #{tpu_custom_call.1} parent=35 // pred_check
          %p241 = pneg %p104
        $region46: #{tpu_custom_call.1} parent=35 // pred_check_branch
          %243 = sbr.rel (%p241) target = $region48
        $region47: #{tpu_custom_call.1} parent=35 // pred_region
          %245 = dma.done [#allocation7], 64
        $region48: #{tpu_custom_call.1} parent=35 // pred_fallthru
          _
        %s246 = sand.u32 %s44, 1
        %s247 = scalar_lea.sflag [#allocation4], %s246
        %s248 = sand.u32 %s44, 1
        %s249 = smul.addr %s248, 8
        %s250 = scalar_lea.vmem [#allocation3], %s249
        %p251 = pneg %p57
        %p252 = pneg %p54
        %p253 = pneg %p83
        %p254 = pneg %p80
        %p255 = pneg %p104
        %p256 = pneg %p101
        %p257 = pneg %p125
        %p258 = pneg %p122
        %p259 = pneg %p151
        %p260 = pneg %p148
        %s261 = sand.u32 %s138, 1
        %s262 = scalar_lea.sflag [#allocation5], %s261
        %s263 = sand.u32 %s138, 1
        %s264 = smul.addr %s263, 8
        %s265 = scalar_lea.vmem [#allocation9], %s264
        %p266 = scmp.eq.s32.totalorder %s27, 0
        // Predicated region
        $region49: #{tpu_custom_call.1} parent=35 // pred_check
          %p267 = pneg %p266
        $region50: #{tpu_custom_call.1} parent=35 // pred_check_branch
          %269 = sbr.rel (%p267) target = $region52
        $region51: #{tpu_custom_call.1} parent=35 // pred_region
          %vm270 = vcmask 31744
          %271 = vst.msk [vmem:[#allocation2] sm:$0xff] %vm270, 0.0
        $region52: #{tpu_custom_call.1} parent=35 // pred_fallthru
          _
        %v272 = vld [vmem:[%s230] sm:$0xff]
        %v273 = vld [vmem:[#allocation2] sm:$0xff]
        %v274 = vld [vmem:[#allocation6] sm:$0xf]
        %vm275 = vcmask 261120
        %v277 = vsel %vm275, %v272, 0
        %v280 = vsel %vm275, %v274, 0
        %282 = vmatpush.xpose.msra.mxu0 0.0
        %283 = vmatpush.xpose.msra.mxu0 0.0
        %284 = vmatpush.xpose.msra.mxu0 0.0
        %285 = vmatpush.xpose.msra.mxu0 0.0
        %286 = vmatpush.xpose.msra.mxu0 0.0
        %287 = vmatpush.xpose.msra.mxu0 0.0
        %288 = vmatpush.xpose.msra.mxu0 0.0
        %289 = vmatpush.xpose.msra.mxu0 0.0
        %290 = vmatpush.xpose.msra.mxu0 0.0
        %291 = vmatpush.xpose.msra.mxu0 0.0
        %292 = vmatpush.xpose.msra.mxu0 0.0
        %293 = vmatpush.xpose.msra.mxu0 0.0
        %294 = vmatpush.xpose.msra.mxu0 0.0
        %295 = vmatpush.xpose.msra.mxu0 0.0
        %296 = vmatpush.xpose.msra.mxu0 0.0
        %297 = vmatpush.xpose.msra.mxu0 %v280
        %298 = vmatmul.f32.gmra.mxu0 %v277
        %v299 = vpop.f32.mrf.mxu0
        %v300 = vadd.f32 0.0, %v299
        %301 = vdwg.mxu0
        %v302 = vadd.f32 %v273, %v300
        %vm303 = vcmask 31744
        %304 = vst.msk [vmem:[#allocation2] sm:$0xff] %vm303, %v302
        // Predicated region
        $region53: #{tpu_custom_call.1} parent=35 // pred_check
          %p305 = pneg %p266
        $region54: #{tpu_custom_call.1} parent=35 // pred_check_branch
          %307 = sbr.rel (%p305) target = $region56
        $region55: #{tpu_custom_call.1} parent=35 // pred_region
          %v308 = vld [vmem:[#allocation2] sm:$0xff]
          %v309 = vld [vmem:[#allocation8] sm:$0xf]
          %v310 = vld [vmem:[%s3] sm:$0x1]
          %v312 = vperm.slane %v310, 0
          %v315 = vsel %vm303, %v308, 0
          %vm317 = vcmask 1043456
          %v319 = vsel %vm317, %v309, 0
          %321 = vmatpush.msra.mxu0 0.0
          %322 = vmatpush.msra.mxu0 0.0
          %323 = vmatpush.msra.mxu0 0.0
          %324 = vmatpush.msra.mxu0 0.0
          %325 = vmatpush.msra.mxu0 0.0
          %326 = vmatpush.msra.mxu0 0.0
          %327 = vmatpush.msra.mxu0 0.0
          %328 = vmatpush.msra.mxu0 0.0
          %329 = vmatpush.msra.mxu0 0.0
          %330 = vmatpush.msra.mxu0 0.0
          %331 = vmatpush.msra.mxu0 0.0
          %332 = vmatpush.msra.mxu0 0.0
          %333 = vmatpush.msra.mxu0 0.0
          %334 = vmatpush.msra.mxu0 0.0
          %335 = vmatpush.msra.mxu0 0.0
          %336 = vmatpush.msra.mxu0 %v319
          %337 = vmatmul.f32.gmra.mxu0 %v315
          %v338 = vpop.f32.mrf.mxu0
          %v339 = vadd.f32 %v312, %v338
          %340 = vdwg.mxu0
          %341 = vst.msk [vmem:[%s265] sm:$0xff] %vm275, %v339
        $region56: #{tpu_custom_call.1} parent=35 // pred_fallthru
          _
        %s342 = sand.u32 %s138, 1
        %s343 = scalar_lea.sflag [#allocation5], %s342
        %s344 = sand.u32 %s138, 1
        %s345 = smul.addr %s344, 8
        %s346 = scalar_lea.vmem [#allocation9], %s345
        // Predicated region
        $region57: #{tpu_custom_call.1} parent=35 // pred_check
          %p347 = pneg %p148
        $region58: #{tpu_custom_call.1} parent=35 // pred_check_branch
          %349 = sbr.rel (%p347) target = $region60
        $region59: #{tpu_custom_call.1} parent=35 // pred_region
          %351 = vsyncadd %s343, 0
          %s352 = smul.addr %s26, 8
          %s353 = scalar_lea.hbm %s4, %s352
          %s355 = sshll.u32 %s346, 4
          %s356 = int_to_ptr.vmem [resolvable:$true] %s355
          %s357 = sshll.u32 %s353, 4
          %s358 = int_to_ptr.hbm [resolvable:$true] %s357
          %360 = dma.vmem_to_hbm [thread:$0]  %s356, 128, %s358, %s343
        $region60: #{tpu_custom_call.1} parent=35 // pred_fallthru
          _
      $region36: #{tpu_custom_call.1} parent=5 // pred_fallthru
        _
      %p361 = scmp.le.s32.totalorder 2, %s17
      // Predicated region
      $region61: #{tpu_custom_call.1} parent=5 // pred_check
        %p362 = pneg %p361
      $region62: #{tpu_custom_call.1} parent=5 // pred_check_branch
        %364 = sbr.rel (%p362) target = $region64
      $region63: #{tpu_custom_call.1} parent=5 // pred_region
        %s365 = ssub.s32 %s17, 2
        // Predicated region
        $region65: #{tpu_custom_call.1} parent=63 // pred_check
          %p366 = pneg %p154
        $region66: #{tpu_custom_call.1} parent=63 // pred_check_branch
          %368 = sbr.rel (%p366) target = $region68
        $region67: #{tpu_custom_call.1} parent=63 // pred_region
          %s369 = sand.u32 %s139, 1
          %s370 = scalar_lea.sflag [#allocation5], %s369
          %s371 = sand.u32 %s139, 1
          %s372 = smul.addr %s371, 8
          %s373 = scalar_lea.vmem [#allocation9], %s372
          %375 = dma.done %s370, 128
        $region68: #{tpu_custom_call.1} parent=63 // pred_fallthru
          _
      $region64: #{tpu_custom_call.1} parent=5 // pred_fallthru
        _
    $region6: #{tpu_custom_call.1} parent=1 // loop_footer
      %s21 = sadd.s32 1, %s17
    $region7: #{tpu_custom_call.1} parent=1 // loop_footer_branch
      %16 = sbr.rel target = $region3
    $region8: #{tpu_custom_call.1} parent=1 // loop_exit
      _
    %376 = vsyncpa [#allocation4], 1
    %s377 = scalar_lea.sflag [#allocation4], 1
    %378 = vsyncpa %s377, 1
    %379 = vsyncpa [#allocation7], 1
    %380 = vsyncpa [#allocation5], 1
    %s381 = scalar_lea.sflag [#allocation5], 1
    %382 = vsyncpa %s381, 1

</llo_original>
